<compile_context>
chip_gen: v7x
topology: tpu7x:2x2x1
jax: 0.10.0
libtpu: 0.0.40
codegen_flags: <defaults>
</compile_context>

<pallas_src>
import math
import functools

import jax
import jax.numpy as jnp
from jax.experimental import pallas as pl
from jax.experimental.pallas import tpu as pltpu

_LOG_2PI = math.log(2.0 * math.pi)

_LANE_TILE = 1024   # lane-dense last dim of the 2-D view (multiple of 128)
_ROW_TILE = 256     # target rows per grid step -> 1 MiB f32 block per stream


def _gll_bayes_kernel(mean_ref, logvar_ref, smm_ref, sml_ref, sll_ref, tgt_ref, out_ref):
    logvar = logvar_ref[...]
    resid = mean_ref[...] - sml_ref[...] - tgt_ref[...]
    scale = jnp.exp(0.5 * sll_ref[...] - logvar)            # EUP slot
    out_ref[...] = -0.5 * (_LOG_2PI + logvar + scale * (smm_ref[...] + resid * resid))


def _gll_plain_kernel(mean_ref, logvar_ref, tgt_ref, out_ref):
    # method != 'bayes': smm = sml = sll = 0
    logvar = logvar_ref[...]
    resid = mean_ref[...] - tgt_ref[...]
    out_ref[...] = -0.5 * (_LOG_2PI + logvar + jnp.exp(-logvar) * (resid * resid))


def _round_up(x, m):
    return (x + m - 1) // m * m


def _choose_tiling(n):
    """Lane-dense 2-D view (rows, cols) and rows-per-block bm with exact tiling."""
    cols = min(_LANE_TILE, _round_up(n, 128))
    rows = _round_up(n, cols) // cols
    num_blocks = pl.cdiv(rows, _ROW_TILE)
    if num_blocks == 1:
        bm = rows                                   # block == full dim -> always legal
    else:
        bm = _round_up(pl.cdiv(rows, num_blocks), 8)  # sublane-aligned, bounded padding
    rows_pad = _round_up(rows, bm)
    return rows_pad, cols, bm


def _to_tiles(x, rows, cols):
    """Pad a flat [n] stream up to rows*cols and reshape (row-major, cheap)."""
    n = x.shape[0]
    total = rows * cols
    if total != n:
        x = jnp.pad(x, (0, total - n))
    return x.reshape(rows, cols)


def _run_elementwise(kernel, streams, n, dtype):
    rows, cols, bm = _choose_tiling(n)
    grid = (rows // bm,)

    tiled = [_to_tiles(s, rows, cols) for s in streams]
    block = pl.BlockSpec((bm, cols), lambda i: (i, 0))

    out = pl.pallas_call(
        kernel,
        out_shape=jax.ShapeDtypeStruct((rows, cols), dtype),
        grid=grid,
        in_specs=[block] * len(tiled),
        out_specs=block,
        compiler_params=pltpu.CompilerParams(
            dimension_semantics=("parallel",),        # shard row-blocks across TCs (v7x)
            vmem_limit_bytes=32 * 1024 * 1024,        # safe on v5e/v6e/v7x; >= 2x need
            allow_input_fusion=[True] * len(tiled),   # let XLA fuse the strided slices
        ),
    )(*tiled)
    return out.reshape(-1)[:n]


@functools.partial(jax.jit, static_argnames=("method",))
def gll_loss(pred_mean, pred_var, target, method="bayes"):
    """Heteroschedastic Gaussian log-likelihood (module default style).

    pred_mean : [N, 2] float32
    pred_var  : [N, 2, 2] float32
    target    : [N] float32
    returns   : [N] float32
    """
    # TODO(synk): homoschedastic style variant not implemented (heteroschedastic is the module default).
    n = pred_mean.shape[0]
    tgt = target.reshape(-1).astype(pred_mean.dtype)
    mean = pred_mean[:, 0]
    logvar = pred_mean[:, 1]

    if method.lower().strip() == "bayes":
        smm = pred_var[:, 0, 0]
        sml = pred_var[:, 0, 1]
        sll = pred_var[:, 1, 1]
        return _run_elementwise(
            _gll_bayes_kernel, [mean, logvar, smm, sml, sll, tgt], n, pred_mean.dtype)
    # non-bayes: do not stream zero arrays from HBM
    return _run_elementwise(_gll_plain_kernel, [mean, logvar, tgt], n, pred_mean.dtype)


def _reference_bayes(pred_mean, pred_var, target):
    mean = pred_mean[:, 0]
    logvar = pred_mean[:, 1]
    smm = pred_var[:, 0, 0]
    sml = pred_var[:, 0, 1]
    sll = pred_var[:, 1, 1]
    return -0.5 * (_LOG_2PI + logvar
                   + jnp.exp(-logvar + 0.5 * sll) * (smm + (mean - sml - target) ** 2))


def _reference_plain(pred_mean, target):
    mean = pred_mean[:, 0]
    logvar = pred_mean[:, 1]
    return -0.5 * (_LOG_2PI + logvar + jnp.exp(-logvar) * (mean - target) ** 2)


if __name__ == "__main__":
    k1, k2, k3, k4, k5, k6 = jax.random.split(jax.random.PRNGKey(0), 6)

    # Small primary case (single block).
    N = 1024
    pred_mean = jax.random.normal(k1, (N, 2), dtype=jnp.float32)
    pred_var = 0.1 * jax.random.normal(k2, (N, 2, 2), dtype=jnp.float32)
    target = jax.random.normal(k3, (N,), dtype=jnp.float32)

    out = gll_loss(pred_mean, pred_var, target, method="bayes")
    jax.block_until_ready(out)
    ref = _reference_bayes(pred_mean, pred_var, target)
    assert out.shape == (N,)
    assert jnp.allclose(out, ref, atol=1e-4, rtol=1e-5), "bayes mismatch vs reference"

    # Non-bayes (3-input kernel), unaligned length exercises lane padding.
    Nu = 1000
    out2 = gll_loss(pred_mean[:Nu], pred_var[:Nu], target[:Nu], method="map")
    jax.block_until_ready(out2)
    ref2 = _reference_plain(pred_mean[:Nu], target[:Nu])
    assert out2.shape == (Nu,)
    assert jnp.allclose(out2, ref2, atol=1e-4, rtol=1e-5), "map mismatch vs reference"

    # Multi-block case: exercises the tiled 1-D grid / pipelined DMA path.
    N3 = 300_000
    pm3 = jax.random.normal(k4, (N3, 2), dtype=jnp.float32)
    pv3 = 0.1 * jax.random.normal(k5, (N3, 2, 2), dtype=jnp.float32)
    t3 = jax.random.normal(k6, (N3,), dtype=jnp.float32)
    out3 = gll_loss(pm3, pv3, t3, method="bayes")
    jax.block_until_ready(out3)
    ref3 = _reference_bayes(pm3, pv3, t3)
    assert out3.shape == (N3,)
    assert jnp.allclose(out3, ref3, atol=1e-4, rtol=1e-5), "tiled bayes mismatch vs reference"

    print("KERNEL_OK")
</pallas_src>

<mosaic_0001>
module attributes {stable_mosaic.version = 11 : i64} {
  func.func @_gll_bayes_kernel(%arg0: i32, %arg1: memref<1x1024xf32, #tpu.memory_space<vmem>>, %arg2: memref<1x1024xf32, #tpu.memory_space<vmem>>, %arg3: memref<1x1024xf32, #tpu.memory_space<vmem>>, %arg4: memref<1x1024xf32, #tpu.memory_space<vmem>>, %arg5: memref<1x1024xf32, #tpu.memory_space<vmem>>, %arg6: memref<1x1024xf32, #tpu.memory_space<vmem>>, %arg7: memref<1x1024xf32, #tpu.memory_space<vmem>>) attributes {dimension_semantics = [#tpu.dimension_semantics<parallel>], iteration_bounds = array<i64: 1>, scalar_prefetch = 0 : i64, scratch_operands = 0 : i64, tpu.core_type = #tpu.core_type<tc>, window_params = [{transform_indices = @transform_0, window_bounds = array<i64: 1, 1024>}, {transform_indices = @transform_1, window_bounds = array<i64: 1, 1024>}, {transform_indices = @transform_2, window_bounds = array<i64: 1, 1024>}, {transform_indices = @transform_3, window_bounds = array<i64: 1, 1024>}, {transform_indices = @transform_4, window_bounds = array<i64: 1, 1024>}, {transform_indices = @transform_5, window_bounds = array<i64: 1, 1024>}, {transform_indices = @transform_6, window_bounds = array<i64: 1, 1024>}]} {
    %c0 = arith.constant 0 : index
    %c0_0 = arith.constant 0 : index
    %0 = vector.load %arg2[%c0, %c0_0] : memref<1x1024xf32, #tpu.memory_space<vmem>>, vector<1x1024xf32>
    %c0_1 = arith.constant 0 : index
    %c0_2 = arith.constant 0 : index
    %1 = vector.load %arg1[%c0_1, %c0_2] : memref<1x1024xf32, #tpu.memory_space<vmem>>, vector<1x1024xf32>
    %c0_3 = arith.constant 0 : index
    %c0_4 = arith.constant 0 : index
    %2 = vector.load %arg4[%c0_3, %c0_4] : memref<1x1024xf32, #tpu.memory_space<vmem>>, vector<1x1024xf32>
    %3 = arith.subf %1, %2 : vector<1x1024xf32>
    %c0_5 = arith.constant 0 : index
    %c0_6 = arith.constant 0 : index
    %4 = vector.load %arg6[%c0_5, %c0_6] : memref<1x1024xf32, #tpu.memory_space<vmem>>, vector<1x1024xf32>
    %5 = arith.subf %3, %4 : vector<1x1024xf32>
    %c0_7 = arith.constant 0 : index
    %c0_8 = arith.constant 0 : index
    %6 = vector.load %arg5[%c0_7, %c0_8] : memref<1x1024xf32, #tpu.memory_space<vmem>>, vector<1x1024xf32>
    %cst = arith.constant 5.000000e-01 : f32
    %7 = vector.broadcast %cst : f32 to vector<1x1024xf32>
    %8 = arith.mulf %7, %6 : vector<1x1024xf32>
    %9 = arith.subf %8, %0 : vector<1x1024xf32>
    %10 = math.exp %9 : vector<1x1024xf32>
    %cst_9 = arith.constant 1.83787704 : f32
    %11 = vector.broadcast %cst_9 : f32 to vector<1x1024xf32>
    %12 = arith.addf %11, %0 : vector<1x1024xf32>
    %c0_10 = arith.constant 0 : index
    %c0_11 = arith.constant 0 : index
    %13 = vector.load %arg3[%c0_10, %c0_11] : memref<1x1024xf32, #tpu.memory_space<vmem>>, vector<1x1024xf32>
    %14 = arith.mulf %5, %5 : vector<1x1024xf32>
    %15 = arith.addf %13, %14 : vector<1x1024xf32>
    %16 = arith.mulf %10, %15 : vector<1x1024xf32>
    %17 = arith.addf %12, %16 : vector<1x1024xf32>
    %cst_12 = arith.constant -5.000000e-01 : f32
    %18 = vector.broadcast %cst_12 : f32 to vector<1x1024xf32>
    %19 = arith.mulf %18, %17 : vector<1x1024xf32>
    %c0_13 = arith.constant 0 : index
    %c0_14 = arith.constant 0 : index
    %20 = vector.load %arg7[%c0_13, %c0_14] : memref<1x1024xf32, #tpu.memory_space<vmem>>, vector<1x1024xf32>
    tpu.vector_store %arg7[%c0_13, %c0_14], %19 {strides = array<i32>} : memref<1x1024xf32, #tpu.memory_space<vmem>>, vector<1x1024xf32>,
    return
  }
  func.func @transform_0(%arg0: i32) -> (i32, i32) {
    %c0_i32 = arith.constant 0 : i32
    %c0_i32_0 = arith.constant 0 : i32
    return %arg0, %c0_i32 : i32, i32
  }
  func.func @transform_1(%arg0: i32) -> (i32, i32) {
    %c0_i32 = arith.constant 0 : i32
    %c0_i32_0 = arith.constant 0 : i32
    return %arg0, %c0_i32 : i32, i32
  }
  func.func @transform_2(%arg0: i32) -> (i32, i32) {
    %c0_i32 = arith.constant 0 : i32
    %c0_i32_0 = arith.constant 0 : i32
    return %arg0, %c0_i32 : i32, i32
  }
  func.func @transform_3(%arg0: i32) -> (i32, i32) {
    %c0_i32 = arith.constant 0 : i32
    %c0_i32_0 = arith.constant 0 : i32
    return %arg0, %c0_i32 : i32, i32
  }
  func.func @transform_4(%arg0: i32) -> (i32, i32) {
    %c0_i32 = arith.constant 0 : i32
    %c0_i32_0 = arith.constant 0 : i32
    return %arg0, %c0_i32 : i32, i32
  }
  func.func @transform_5(%arg0: i32) -> (i32, i32) {
    %c0_i32 = arith.constant 0 : i32
    %c0_i32_0 = arith.constant 0 : i32
    return %arg0, %c0_i32 : i32, i32
  }
  func.func @transform_6(%arg0: i32) -> (i32, i32) {
    %c0_i32 = arith.constant 0 : i32
    %c0_i32_0 = arith.constant 0 : i32
    return %arg0, %c0_i32 : i32, i32
  }
}

</mosaic_0001>

<llo_original>
// kernel: gll_loss.2
$region0: #{gll_loss.2}
  #allocation0 [shape = 'u32[]', space=smem, size = 0x4, offset = 0x4, fixed_abs, tag = 'smem constant byte address 0x4 - core index']
  #allocation1 [shape = 'u32[144,128]{1,0:T(1,128)}', space=vmem, size = 0x12000, scoped, tag = 'internal scratch']
  #allocation2 [shape = 'u32[2048]{0}', space=vmem, size = 0x2000, scoped, tag = 'scoped memory for gll_loss.2']
  #allocation3 [shape = 'u32[2048]{0}', space=vmem, size = 0x2000, scoped, tag = 'scoped memory for gll_loss.2']
  #allocation4 [shape = 'u32[2048]{0}', space=vmem, size = 0x2000, scoped, tag = 'scoped memory for gll_loss.2']
  #allocation5 [shape = 'u32[2048]{0}', space=vmem, size = 0x2000, scoped, tag = 'scoped memory for gll_loss.2']
  #allocation6 [shape = 'u32[2048]{0}', space=vmem, size = 0x2000, scoped, tag = 'scoped memory for gll_loss.2']
  #allocation7 [shape = 'u32[2048]{0}', space=vmem, size = 0x2000, scoped, tag = 'scoped memory for gll_loss.2']
  #allocation8 [shape = 'u32[2048]{0}', space=vmem, size = 0x2000, scoped, tag = 'scoped memory for gll_loss.2']
  #allocation9 [shape = 'u32[2048]{0}', space=vmem, size = 0x2000, scoped, tag = 'scoped memory for gll_loss.2']
  #allocation10 [shape = 'u32[2048]{0}', space=vmem, size = 0x2000, scoped, tag = 'scoped memory for gll_loss.2']
  #allocation11 [shape = 'u32[2048]{0}', space=vmem, size = 0x2000, scoped, tag = 'scoped memory for gll_loss.2']
  #allocation12 [shape = 'u32[2048]{0}', space=vmem, size = 0x2000, scoped, tag = 'scoped memory for gll_loss.2']
  #allocation13 [shape = 'u32[2048]{0}', space=vmem, size = 0x2000, scoped, tag = 'scoped memory for gll_loss.2']
  #allocation14 [shape = 'u32[2048]{0}', space=vmem, size = 0x2000, scoped, tag = 'scoped memory for gll_loss.2']
  #allocation15 [shape = 'u32[2048]{0}', space=vmem, size = 0x2000, scoped, tag = 'scoped memory for gll_loss.2']
  #allocation16 [shape = 'u32[2048]{0}', space=vmem, size = 0x2000, scoped, tag = 'scoped memory for gll_loss.2']
  #allocation17 [shape = 'u32[2048]{0}', space=vmem, size = 0x2000, scoped, tag = 'scoped memory for gll_loss.2']
  #allocation18 [shape = 'u32[2048]{0}', space=vmem, size = 0x2000, scoped, tag = 'scoped memory for gll_loss.2']
  #allocation19 [shape = 'u32[2048]{0}', space=vmem, size = 0x2000, scoped, tag = 'scoped memory for gll_loss.2']
  #allocation20 [shape = 'u32[2048]{0}', space=vmem, size = 0x2000, scoped, tag = 'scoped memory for gll_loss.2']
  #allocation21 [shape = 'u32[2048]{0}', space=vmem, size = 0x2000, scoped, tag = 'scoped memory for gll_loss.2']
  #allocation22 [shape = 'u32[2048]{0}', space=vmem, size = 0x2000, scoped, tag = 'scoped memory for gll_loss.2']
  #allocation23 [shape = 'u32[2048]{0}', space=vmem, size = 0x2000, scoped, tag = 'scoped memory for gll_loss.2']
  #allocation24 [shape = 'u32[2048]{0}', space=vmem, size = 0x2000, scoped, tag = 'scoped memory for gll_loss.2']
  #allocation25 [shape = 'u32[2048]{0}', space=vmem, size = 0x2000, scoped, tag = 'scoped memory for gll_loss.2']
  #allocation26 [shape = 'u32[2048]{0}', space=vmem, size = 0x2000, scoped, tag = 'scoped memory for gll_loss.2']
  %s0 = inlined_call_operand.vmem [shape: f32[1,1024], index: 0, kind: input, shape index: {}]
  %s1 = inlined_call_operand.hbm [shape: f32[1024,2,2], index: 1, kind: input, shape index: {}]
  %s2 = inlined_call_operand.hbm [shape: f32[1024,2], index: 2, kind: input, shape index: {}]
  %s3 = inlined_call_operand.hbm [shape: f32[1,1024], index: 3, kind: output, shape index: {}]
  %s4 = sld [smem:[#allocation0]]
  $region54: #{gll_loss.2} parent=0
    _
  %s6 = ssub.s32 1, %s4
  %s7 = scalar_select 0, %s6, %s4
  $region1: #{gll_loss.2} parent=0
    #allocation27 [shape = 'u8[8192]{0}', space=vmem, size = 0x2000, scoped, tag = 'operand span for operand 2']
    #allocation28 [shape = 's32[1]{0}', space=sflag, size = 0x4, scoped, tag = 'scoped memory for gll_loss.2']
    #allocation29 [shape = 's32[1]{0}', space=sflag, size = 0x4, scoped, tag = 'scoped memory for gll_loss.2']
    #allocation30 [shape = 'u8[8192]{0}', space=vmem, size = 0x2000, scoped, tag = 'operand span for operand 2']
    #allocation31 [shape = 's32[1]{0}', space=sflag, size = 0x4, scoped, tag = 'scoped memory for gll_loss.2']
    #allocation32 [shape = 'u8[8192]{0}', space=vmem, size = 0x2000, scoped, tag = 'operand span for operand 1']
    #allocation33 [shape = 'u8[8192]{0}', space=vmem, size = 0x2000, scoped, tag = 'operand span for operand 1']
    #allocation34 [shape = 's32[1]{0}', space=sflag, size = 0x4, scoped, tag = 'scoped memory for gll_loss.2']
    #allocation35 [shape = 'u8[8192]{0}', space=vmem, size = 0x2000, scoped, tag = 'operand span for operand 1']
    #allocation36 [shape = 'u8[4096]{0}', space=vmem, size = 0x1000, scoped, tag = 'output window, operand 0, single buffered']
    #allocation37 [shape = 'u8[4096]{0}', space=vmem, size = 0x1000, dematerialized = true, scoped, tag = 'FusionAdapter Buffer %fusion.5 = f32[1,1024]{1,0:T(1,128)} fusion(%param_2.8), kind=kLoop, calls=%fused_computation.5.clone, metadata={op_name="jit(gll_loss)/reshape;jit(gll_loss)/squeeze"}']
    #allocation38 [shape = 'u8[4096]{0}', space=vmem, size = 0x1000, dematerialized = true, scoped, tag = 'FusionAdapter Buffer %fusion.4 = f32[1,1024]{1,0:T(1,128)} fusion(%param_2.8), kind=kLoop, calls=%fused_computation.4.clone, metadata={op_name="jit(gll_loss)/reshape;jit(gll_loss)/squeeze"}']
    #allocation39 [shape = 'u8[4096]{0}', space=vmem, size = 0x1000, dematerialized = true, scoped, tag = 'FusionAdapter Buffer %fusion.3 = f32[1,1024]{1,0:T(1,128)} fusion(%param_1.7), kind=kLoop, calls=%fused_computation.3.clone, metadata={op_name="jit(gll_loss)/reshape;jit(gll_loss)/squeeze"}']
    #allocation40 [shape = 'u8[4096]{0}', space=vmem, size = 0x1000, dematerialized = true, scoped, tag = 'FusionAdapter Buffer %fusion.2 = f32[1,1024]{1,0:T(1,128)} fusion(%param_1.7), kind=kLoop, calls=%fused_computation.2.clone, metadata={op_name="jit(gll_loss)/reshape;jit(gll_loss)/squeeze"}']
    #allocation41 [shape = 'u8[4096]{0}', space=vmem, size = 0x1000, dematerialized = true, scoped, tag = 'FusionAdapter Buffer %fusion.1 = f32[1,1024]{1,0:T(1,128)} fusion(%param_1.7), kind=kLoop, calls=%fused_computation.1.clone, metadata={op_name="jit(gll_loss)/reshape;jit(gll_loss)/squeeze"}']
    %8 = vsyncpa [#allocation28], 0
    %9 = vsyncpa [#allocation31], 0
    %10 = vsyncpa [#allocation34], 0
    %11 = vsyncpa [#allocation29], 0
    // Predicated region
    $region2: #{gll_loss.2} parent=1 // pred_check
      _
    $region3: #{gll_loss.2} parent=1 // pred_check_branch
      %13 = sbr.rel (0) target = $region5
    $region4: #{gll_loss.2} parent=1 // pred_region
      %s15 = ssub.s32 256, 256
      %16 = vsyncadd [#allocation28], %s15
      %s18 = sshll.u32 [#allocation27], 4
      %s19 = int_to_ptr.vmem [resolvable:$true] %s18
      %21 = dma.hbm_to_vmem [thread:$0]  %s2, 256, %s19, [#allocation28]
    $region5: #{gll_loss.2} parent=1 // pred_fallthru
      _
    // Predicated region
    $region6: #{gll_loss.2} parent=1 // pred_check
      _
    $region7: #{gll_loss.2} parent=1 // pred_check_branch
      %23 = sbr.rel (0) target = $region9
    $region8: #{gll_loss.2} parent=1 // pred_region
      %s25 = ssub.s32 256, 256
      %26 = vsyncadd [#allocation31], %s25
      %s28 = sshll.u32 [#allocation30], 4
      %s29 = int_to_ptr.vmem [resolvable:$true] %s28
      %31 = dma.hbm_to_vmem [thread:$0]  %s2, 256, %s29, [#allocation31]
    $region9: #{gll_loss.2} parent=1 // pred_fallthru
      _
    // Predicated region
    $region10: #{gll_loss.2} parent=1 // pred_check
      _
    $region11: #{gll_loss.2} parent=1 // pred_check_branch
      %33 = sbr.rel (0) target = $region13
    $region12: #{gll_loss.2} parent=1 // pred_region
      %s35 = ssub.s32 256, 256
      %36 = vsyncadd [#allocation31], %s35
      %s38 = sshll.u32 [#allocation32], 4
      %s39 = int_to_ptr.vmem [resolvable:$true] %s38
      %41 = dma.hbm_to_vmem [thread:$0]  %s1, 256, %s39, [#allocation31]
    $region13: #{gll_loss.2} parent=1 // pred_fallthru
      _
    // Predicated region
    $region14: #{gll_loss.2} parent=1 // pred_check
      _
    $region15: #{gll_loss.2} parent=1 // pred_check_branch
      %43 = sbr.rel (0) target = $region17
    $region16: #{gll_loss.2} parent=1 // pred_region
      %s45 = ssub.s32 256, 256
      %46 = vsyncadd [#allocation34], %s45
      %s48 = sshll.u32 [#allocation33], 4
      %s49 = int_to_ptr.vmem [resolvable:$true] %s48
      %51 = dma.hbm_to_vmem [thread:$0]  %s1, 256, %s49, [#allocation34]
    $region17: #{gll_loss.2} parent=1 // pred_fallthru
      _
    // Predicated region
    $region18: #{gll_loss.2} parent=1 // pred_check
      _
    $region19: #{gll_loss.2} parent=1 // pred_check_branch
      %53 = sbr.rel (0) target = $region21
    $region20: #{gll_loss.2} parent=1 // pred_region
      %s55 = ssub.s32 256, 256
      %56 = vsyncadd [#allocation34], %s55
      %s57 = scalar_lea.hbm %s1, 256
      %s59 = sshll.u32 [#allocation35], 4
      %s60 = int_to_ptr.vmem [resolvable:$true] %s59
      %62 = dma.hbm_to_vmem [thread:$0]  %s57, 256, %s60, [#allocation34]
    $region21: #{gll_loss.2} parent=1 // pred_fallthru
      _
    // Predicated region
    $region22: #{gll_loss.2} parent=1 // pred_check
      _
    $region23: #{gll_loss.2} parent=1 // pred_check_branch
      %64 = sbr.rel (0) target = $region25
    $region24: #{gll_loss.2} parent=1 // pred_region
      _
    $region25: #{gll_loss.2} parent=1 // pred_fallthru
      _
    // Predicated region
    $region26: #{gll_loss.2} parent=1 // pred_check
      _
    $region27: #{gll_loss.2} parent=1 // pred_check_branch
      %66 = sbr.rel (0) target = $region29
    $region28: #{gll_loss.2} parent=1 // pred_region
      %67 = dma.done [#allocation28], 256
    $region29: #{gll_loss.2} parent=1 // pred_fallthru
      _
    // Predicated region
    $region30: #{gll_loss.2} parent=1 // pred_check
      _
    $region31: #{gll_loss.2} parent=1 // pred_check_branch
      %69 = sbr.rel (0) target = $region33
    $region32: #{gll_loss.2} parent=1 // pred_region
      %70 = dma.done [#allocation31], 256
    $region33: #{gll_loss.2} parent=1 // pred_fallthru
      _
    // Predicated region
    $region34: #{gll_loss.2} parent=1 // pred_check
      _
    $region35: #{gll_loss.2} parent=1 // pred_check_branch
      %72 = sbr.rel (0) target = $region37
    $region36: #{gll_loss.2} parent=1 // pred_region
      %73 = dma.done [#allocation31], 256
    $region37: #{gll_loss.2} parent=1 // pred_fallthru
      _
    // Predicated region
    $region38: #{gll_loss.2} parent=1 // pred_check
      _
    $region39: #{gll_loss.2} parent=1 // pred_check_branch
      %75 = sbr.rel (0) target = $region41
    $region40: #{gll_loss.2} parent=1 // pred_region
      %76 = dma.done [#allocation34], 256
    $region41: #{gll_loss.2} parent=1 // pred_fallthru
      _
    // Predicated region
    $region42: #{gll_loss.2} parent=1 // pred_check
      _
    $region43: #{gll_loss.2} parent=1 // pred_check_branch
      %78 = sbr.rel (0) target = $region45
    $region44: #{gll_loss.2} parent=1 // pred_region
      %79 = dma.done [#allocation34], 256
    $region45: #{gll_loss.2} parent=1 // pred_fallthru
      _
    %v80 = vld [vmem:[#allocation27] sm:$0x3]
    %82 = vst [vmem:[#allocation37] sm:$0x1] %v80
    %s83 = scalar_lea.vmem [#allocation27], 2
    %v84 = vld [vmem:[%s83] sm:$0x3]
    %s85 = scalar_lea.vmem [#allocation37], 1
    %87 = vst [vmem:[%s85] sm:$0x1] %v84
    %s88 = scalar_lea.vmem [#allocation27], 4
    %v89 = vld [vmem:[%s88] sm:$0x3]
    %s90 = scalar_lea.vmem [#allocation37], 2
    %92 = vst [vmem:[%s90] sm:$0x1] %v89
    %s93 = scalar_lea.vmem [#allocation27], 6
    %v94 = vld [vmem:[%s93] sm:$0x3]
    %s95 = scalar_lea.vmem [#allocation37], 3
    %97 = vst [vmem:[%s95] sm:$0x1] %v94
    %s98 = scalar_lea.vmem [#allocation27], 8
    %v99 = vld [vmem:[%s98] sm:$0x3]
    %s100 = scalar_lea.vmem [#allocation37], 4
    %102 = vst [vmem:[%s100] sm:$0x1] %v99
    %s103 = scalar_lea.vmem [#allocation27], 10
    %v104 = vld [vmem:[%s103] sm:$0x3]
    %s105 = scalar_lea.vmem [#allocation37], 5
    %107 = vst [vmem:[%s105] sm:$0x1] %v104
    %s108 = scalar_lea.vmem [#allocation27], 12
    %v109 = vld [vmem:[%s108] sm:$0x3]
    %s110 = scalar_lea.vmem [#allocation37], 6
    %112 = vst [vmem:[%s110] sm:$0x1] %v109
    %s113 = scalar_lea.vmem [#allocation27], 14
    %v114 = vld [vmem:[%s113] sm:$0x3]
    %s115 = scalar_lea.vmem [#allocation37], 7
    %117 = vst [vmem:[%s115] sm:$0x1] %v114
    %v118 = vld [vmem:[#allocation30] sm:$0x3]
    %vm119 = vcmask 1040384
    %v120 = vsel %vm119, 0, %v118
    %v121 = vrot.slane %v120, 1
    %123 = vst [vmem:[#allocation38] sm:$0x1] %v121
    %s124 = scalar_lea.vmem [#allocation30], 2
    %v125 = vld [vmem:[%s124] sm:$0x3]
    %vm126 = vcmask 1040384
    %v127 = vsel %vm126, 0, %v125
    %v128 = vrot.slane %v127, 1
    %s129 = scalar_lea.vmem [#allocation38], 1
    %131 = vst [vmem:[%s129] sm:$0x1] %v128
    %s132 = scalar_lea.vmem [#allocation30], 4
    %v133 = vld [vmem:[%s132] sm:$0x3]
    %vm134 = vcmask 1040384
    %v135 = vsel %vm134, 0, %v133
    %v136 = vrot.slane %v135, 1
    %s137 = scalar_lea.vmem [#allocation38], 2
    %139 = vst [vmem:[%s137] sm:$0x1] %v136
    %s140 = scalar_lea.vmem [#allocation30], 6
    %v141 = vld [vmem:[%s140] sm:$0x3]
    %vm142 = vcmask 1040384
    %v143 = vsel %vm142, 0, %v141
    %v144 = vrot.slane %v143, 1
    %s145 = scalar_lea.vmem [#allocation38], 3
    %147 = vst [vmem:[%s145] sm:$0x1] %v144
    %s148 = scalar_lea.vmem [#allocation30], 8
    %v149 = vld [vmem:[%s148] sm:$0x3]
    %vm150 = vcmask 1040384
    %v151 = vsel %vm150, 0, %v149
    %v152 = vrot.slane %v151, 1
    %s153 = scalar_lea.vmem [#allocation38], 4
    %155 = vst [vmem:[%s153] sm:$0x1] %v152
    %s156 = scalar_lea.vmem [#allocation30], 10
    %v157 = vld [vmem:[%s156] sm:$0x3]
    %vm158 = vcmask 1040384
    %v159 = vsel %vm158, 0, %v157
    %v160 = vrot.slane %v159, 1
    %s161 = scalar_lea.vmem [#allocation38], 5
    %163 = vst [vmem:[%s161] sm:$0x1] %v160
    %s164 = scalar_lea.vmem [#allocation30], 12
    %v165 = vld [vmem:[%s164] sm:$0x3]
    %vm166 = vcmask 1040384
    %v167 = vsel %vm166, 0, %v165
    %v168 = vrot.slane %v167, 1
    %s169 = scalar_lea.vmem [#allocation38], 6
    %171 = vst [vmem:[%s169] sm:$0x1] %v168
    %s172 = scalar_lea.vmem [#allocation30], 14
    %v173 = vld [vmem:[%s172] sm:$0x3]
    %vm174 = vcmask 1040384
    %v175 = vsel %vm174, 0, %v173
    %v176 = vrot.slane %v175, 1
    %s177 = scalar_lea.vmem [#allocation38], 7
    %179 = vst [vmem:[%s177] sm:$0x1] %v176
    %v180 = vld [vmem:[#allocation32] sm:$0x3]
    %182 = vst [vmem:[#allocation39] sm:$0x1] %v180
    %s183 = scalar_lea.vmem [#allocation32], 2
    %v184 = vld [vmem:[%s183] sm:$0x3]
    %s185 = scalar_lea.vmem [#allocation39], 1
    %187 = vst [vmem:[%s185] sm:$0x1] %v184
    %s188 = scalar_lea.vmem [#allocation32], 4
    %v189 = vld [vmem:[%s188] sm:$0x3]
    %s190 = scalar_lea.vmem [#allocation39], 2
    %192 = vst [vmem:[%s190] sm:$0x1] %v189
    %s193 = scalar_lea.vmem [#allocation32], 6
    %v194 = vld [vmem:[%s193] sm:$0x3]
    %s195 = scalar_lea.vmem [#allocation39], 3
    %197 = vst [vmem:[%s195] sm:$0x1] %v194
    %s198 = scalar_lea.vmem [#allocation32], 8
    %v199 = vld [vmem:[%s198] sm:$0x3]
    %s200 = scalar_lea.vmem [#allocation39], 4
    %202 = vst [vmem:[%s200] sm:$0x1] %v199
    %s203 = scalar_lea.vmem [#allocation32], 10
    %v204 = vld [vmem:[%s203] sm:$0x3]
    %s205 = scalar_lea.vmem [#allocation39], 5
    %207 = vst [vmem:[%s205] sm:$0x1] %v204
    %s208 = scalar_lea.vmem [#allocation32], 12
    %v209 = vld [vmem:[%s208] sm:$0x3]
    %s210 = scalar_lea.vmem [#allocation39], 6
    %212 = vst [vmem:[%s210] sm:$0x1] %v209
    %s213 = scalar_lea.vmem [#allocation32], 14
    %v214 = vld [vmem:[%s213] sm:$0x3]
    %s215 = scalar_lea.vmem [#allocation39], 7
    %217 = vst [vmem:[%s215] sm:$0x1] %v214
    %v218 = vld [vmem:[#allocation33] sm:$0x3]
    %vm219 = vcmask 1040384
    %v220 = vsel %vm219, 0, %v218
    %v221 = vrot.slane %v220, 1
    %223 = vst [vmem:[#allocation40] sm:$0x1] %v221
    %s224 = scalar_lea.vmem [#allocation33], 2
    %v225 = vld [vmem:[%s224] sm:$0x3]
    %vm226 = vcmask 1040384
    %v227 = vsel %vm226, 0, %v225
    %v228 = vrot.slane %v227, 1
    %s229 = scalar_lea.vmem [#allocation40], 1
    %231 = vst [vmem:[%s229] sm:$0x1] %v228
    %s232 = scalar_lea.vmem [#allocation33], 4
    %v233 = vld [vmem:[%s232] sm:$0x3]
    %vm234 = vcmask 1040384
    %v235 = vsel %vm234, 0, %v233
    %v236 = vrot.slane %v235, 1
    %s237 = scalar_lea.vmem [#allocation40], 2
    %239 = vst [vmem:[%s237] sm:$0x1] %v236
    %s240 = scalar_lea.vmem [#allocation33], 6
    %v241 = vld [vmem:[%s240] sm:$0x3]
    %vm242 = vcmask 1040384
    %v243 = vsel %vm242, 0, %v241
    %v244 = vrot.slane %v243, 1
    %s245 = scalar_lea.vmem [#allocation40], 3
    %247 = vst [vmem:[%s245] sm:$0x1] %v244
    %s248 = scalar_lea.vmem [#allocation33], 8
    %v249 = vld [vmem:[%s248] sm:$0x3]
    %vm250 = vcmask 1040384
    %v251 = vsel %vm250, 0, %v249
    %v252 = vrot.slane %v251, 1
    %s253 = scalar_lea.vmem [#allocation40], 4
    %255 = vst [vmem:[%s253] sm:$0x1] %v252
    %s256 = scalar_lea.vmem [#allocation33], 10
    %v257 = vld [vmem:[%s256] sm:$0x3]
    %vm258 = vcmask 1040384
    %v259 = vsel %vm258, 0, %v257
    %v260 = vrot.slane %v259, 1
    %s261 = scalar_lea.vmem [#allocation40], 5
    %263 = vst [vmem:[%s261] sm:$0x1] %v260
    %s264 = scalar_lea.vmem [#allocation33], 12
    %v265 = vld [vmem:[%s264] sm:$0x3]
    %vm266 = vcmask 1040384
    %v267 = vsel %vm266, 0, %v265
    %v268 = vrot.slane %v267, 1
    %s269 = scalar_lea.vmem [#allocation40], 6
    %271 = vst [vmem:[%s269] sm:$0x1] %v268
    %s272 = scalar_lea.vmem [#allocation33], 14
    %v273 = vld [vmem:[%s272] sm:$0x3]
    %vm274 = vcmask 1040384
    %v275 = vsel %vm274, 0, %v273
    %v276 = vrot.slane %v275, 1
    %s277 = scalar_lea.vmem [#allocation40], 7
    %279 = vst [vmem:[%s277] sm:$0x1] %v276
    %v280 = vld [vmem:[#allocation35] sm:$0x3]
    %vm281 = vcmask 1040384
    %v282 = vsel %vm281, 0, %v280
    %v283 = vrot.slane %v282, 1
    %285 = vst [vmem:[#allocation41] sm:$0x1] %v283
    %s286 = scalar_lea.vmem [#allocation35], 2
    %v287 = vld [vmem:[%s286] sm:$0x3]
    %vm288 = vcmask 1040384
    %v289 = vsel %vm288, 0, %v287
    %v290 = vrot.slane %v289, 1
    %s291 = scalar_lea.vmem [#allocation41], 1
    %293 = vst [vmem:[%s291] sm:$0x1] %v290
    %s294 = scalar_lea.vmem [#allocation35], 4
    %v295 = vld [vmem:[%s294] sm:$0x3]
    %vm296 = vcmask 1040384
    %v297 = vsel %vm296, 0, %v295
    %v298 = vrot.slane %v297, 1
    %s299 = scalar_lea.vmem [#allocation41], 2
    %301 = vst [vmem:[%s299] sm:$0x1] %v298
    %s302 = scalar_lea.vmem [#allocation35], 6
    %v303 = vld [vmem:[%s302] sm:$0x3]
    %vm304 = vcmask 1040384
    %v305 = vsel %vm304, 0, %v303
    %v306 = vrot.slane %v305, 1
    %s307 = scalar_lea.vmem [#allocation41], 3
    %309 = vst [vmem:[%s307] sm:$0x1] %v306
    %s310 = scalar_lea.vmem [#allocation35], 8
    %v311 = vld [vmem:[%s310] sm:$0x3]
    %vm312 = vcmask 1040384
    %v313 = vsel %vm312, 0, %v311
    %v314 = vrot.slane %v313, 1
    %s315 = scalar_lea.vmem [#allocation41], 4
    %317 = vst [vmem:[%s315] sm:$0x1] %v314
    %s318 = scalar_lea.vmem [#allocation35], 10
    %v319 = vld [vmem:[%s318] sm:$0x3]
    %vm320 = vcmask 1040384
    %v321 = vsel %vm320, 0, %v319
    %v322 = vrot.slane %v321, 1
    %s323 = scalar_lea.vmem [#allocation41], 5
    %325 = vst [vmem:[%s323] sm:$0x1] %v322
    %s326 = scalar_lea.vmem [#allocation35], 12
    %v327 = vld [vmem:[%s326] sm:$0x3]
    %vm328 = vcmask 1040384
    %v329 = vsel %vm328, 0, %v327
    %v330 = vrot.slane %v329, 1
    %s331 = scalar_lea.vmem [#allocation41], 6
    %333 = vst [vmem:[%s331] sm:$0x1] %v330
    %s334 = scalar_lea.vmem [#allocation35], 14
    %v335 = vld [vmem:[%s334] sm:$0x3]
    %vm336 = vcmask 1040384
    %v337 = vsel %vm336, 0, %v335
    %v338 = vrot.slane %v337, 1
    %s339 = scalar_lea.vmem [#allocation41], 7
    %341 = vst [vmem:[%s339] sm:$0x1] %v338
    %v342 = vld [vmem:[#allocation38] sm:$0xff]
    %v343 = vld [vmem:[#allocation37] sm:$0xff]
    %v344 = vld [vmem:[#allocation40] sm:$0xff]
    %v345 = vsub.f32 %v343, %v344
    %v346 = vld [vmem:[%s0] sm:$0xff]
    %v347 = vsub.f32 %v345, %v346
    %v348 = vld [vmem:[#allocation41] sm:$0xff]
    %v349 = vmul.f32 %v348, 0.5
    %v350 = vsub.f32 %v349, %v342
    %v351 = vmul.f32 %v350, 1.442695
    %v352 = vpow.pop %v351
    %v353 = vadd.f32 %v342, 1.837877
    %v354 = vld [vmem:[#allocation39] sm:$0xff]
    %v355 = vmul.f32 %v347, %v347
    %v356 = vadd.f32 %v354, %v355
    %v357 = vmul.f32 %v352, %v356
    %v358 = vadd.f32 %v353, %v357
    %v359 = vmul.f32 %v358, -0.5
    %360 = vst [vmem:[#allocation36] sm:$0xff] %v359
    // Predicated region
    $region46: #{gll_loss.2} parent=1 // pred_check
      _
    $region47: #{gll_loss.2} parent=1 // pred_check_branch
      %362 = sbr.rel (0) target = $region49
    $region48: #{gll_loss.2} parent=1 // pred_region
      %s364 = ssub.s32 128, 128
      %365 = vsyncadd [#allocation29], %s364
      %s367 = sshll.u32 [#allocation36], 4
      %s368 = int_to_ptr.vmem [resolvable:$true] %s367
      %370 = dma.vmem_to_hbm [thread:$0]  %s368, 128, %s3, [#allocation29]
    $region49: #{gll_loss.2} parent=1 // pred_fallthru
      _
    // Predicated region
    $region50: #{gll_loss.2} parent=1 // pred_check
      _
    $region51: #{gll_loss.2} parent=1 // pred_check_branch
      %372 = sbr.rel (0) target = $region53
    $region52: #{gll_loss.2} parent=1 // pred_region
      %373 = dma.done [#allocation29], 128
    $region53: #{gll_loss.2} parent=1 // pred_fallthru
      _
    %374 = vsyncpa [#allocation28], 1
    %375 = vsyncpa [#allocation31], 1
    %376 = vsyncpa [#allocation34], 1
    %377 = vsyncpa [#allocation29], 1

</llo_original>
